<compile_context>
chip_gen: v5e
topology: v5e:2x2
jax: 0.10.0
libtpu: 0.0.40
codegen_flags: <defaults>
</compile_context>

<pallas_src>
import functools

import jax
import jax.numpy as jnp
from jax.experimental import pallas as pl
from jax.experimental.pallas import tpu as pltpu

_MIB = 1024 * 1024


# --------------------------------------------------------------------------
# Pallas kernel
# --------------------------------------------------------------------------
def _kl_div_kernel(mu_ref, lv_ref, o_ref, acc_ref, *, total_rows, block_rows,
                   steps, scale, masked):
    """Streams (block_rows, C) tiles of mu / log_var, accumulates
    sum(exp(lv) - lv - 1 + mu^2) into a lane-dense (8, C) f32 scratch and
    writes the scaled scalar partial once per split on the last step."""
    p = pl.program_id(0)          # parallel split (per-TensorCore on v7x)
    i = pl.program_id(1)          # reduction step within the split

    @pl.when(i == 0)
    def _init():
        acc_ref[...] = jnp.zeros_like(acc_ref)

    # Inputs arrive in their native dtype; upcast to f32 right after the load
    # (cheap VPU cast; keeps v5e, which has no bf16 VPU/EUP, in f32 math).
    mu = mu_ref[...].astype(jnp.float32)
    lv = lv_ref[...].astype(jnp.float32)

    # exp -> EUP slot, rest -> VPU; all of it hides under the input DMA.
    term = jnp.exp(lv) - lv + (mu * mu - 1.0)

    if masked:
        # One select on `term` (after exp, so OOB garbage incl. inf/NaN is
        # selected away).  `rows` are the *logical* row indices of this block.
        row0 = (p * steps + i) * block_rows
        rows = row0 + jax.lax.broadcasted_iota(jnp.int32, term.shape, 0)
        term = jnp.where(rows < total_rows, term, 0.0)

    if block_rows % 8 == 0:
        # Lane-dense accumulation: fold sublane groups with pure VPU adds;
        # no cross-lane XLU reduce and no (1,1) read-modify-write per step.
        acc_ref[...] += jnp.sum(term.reshape(-1, 8, term.shape[-1]), axis=0)

        @pl.when(i == steps - 1)
        def _finalize():
            o_ref[...] = jnp.sum(acc_ref[...], keepdims=True) * scale
    else:
        # Tiny single-block case (total_rows < 8): reduce directly.
        o_ref[...] = jnp.sum(term, keepdims=True) * scale


# --------------------------------------------------------------------------
# Wrapper
# --------------------------------------------------------------------------
def _vmem_capacity_bytes():
    try:
        cap = getattr(pltpu.get_tpu_info(), "vmem_capacity_bytes", None)
        if cap:
            return int(cap)
    except Exception:
        pass
    return 64 * _MIB          # conservative (v7x-sized) fallback


def kl_div_loss(mu, log_var, lambd=1.0, block_rows=None):
    """mu, log_var: [B, D] -> scalar KL loss (matches the PyTorch module)."""
    assert mu.shape == log_var.shape and mu.ndim == 2
    B, D = mu.shape
    N = B * D

    # The loss is a full sum, so row structure is irrelevant: present a
    # lane-dense [N/128, 128] slab whenever the free metadata reshape applies.
    if N % 128 == 0:
        R, C = N // 128, 128
        mu2, lv2 = mu.reshape(R, C), log_var.reshape(R, C)
    else:
        R, C = B, D
        mu2, lv2 = mu, log_var
        # TODO(synk): for huge D with N % 128 != 0, add a column grid axis
        # instead of a single (>=8, D) row block.

    itemsize = max(mu.dtype.itemsize, log_var.dtype.itemsize)

    if R < 8:
        TB = R                         # single full-dim block (always legal)
    else:
        # Target ~1-4 MiB per input block (128 MiB chips -> 4 MiB, 64 MiB
        # v7x -> 2 MiB): amortizes the ~0.35 us/step overhead while keeping
        # 2 inputs x 2 buffers well under every generation's VMEM budget.
        cap = _vmem_capacity_bytes()
        tgt_bytes = int(min(4 * _MIB, max(1 * _MIB, cap // 32)))
        TB = max(8, tgt_bytes // max(1, C * itemsize))
        if block_rows is not None:
            TB = min(TB, int(block_rows))
        TB = max(8, (min(TB, R) // 8) * 8)

    num_blocks = pl.cdiv(R, TB)
    # 2-way parallel split across TensorCores when there is enough work;
    # on 1-TC chips it is just a serial loop of the same total length.
    P = 2 if num_blocks >= 4 else 1
    steps = pl.cdiv(num_blocks, P)
    masked = (P * steps * TB) != R

    scale = 0.5 * float(lambd) / float(B)
    blk_bytes = TB * C * (mu.dtype.itemsize + log_var.dtype.itemsize)
    vmem_limit = int(max(32 * _MIB, min(96 * _MIB, 3 * blk_bytes + 4 * _MIB)))

    kernel = functools.partial(
        _kl_div_kernel,
        total_rows=R, block_rows=TB, steps=steps, scale=scale, masked=masked)

    partials = pl.pallas_call(
        kernel,
        out_shape=jax.ShapeDtypeStruct((P, 1), jnp.float32),
        grid=(P, steps),
        in_specs=[
            pl.BlockSpec((TB, C), lambda p, i: (p * steps + i, 0)),
            pl.BlockSpec((TB, C), lambda p, i: (p * steps + i, 0)),
        ],
        out_specs=pl.BlockSpec((1, 1), lambda p, i: (p, 0)),
        scratch_shapes=[pltpu.VMEM((8, C), jnp.float32)],
        compiler_params=pltpu.CompilerParams(
            dimension_semantics=("parallel", "arbitrary"),
            vmem_limit_bytes=vmem_limit,
        ),
    )(mu2, lv2)

    out = jnp.sum(partials)
    return out.astype(jnp.promote_types(mu.dtype, log_var.dtype))


# --------------------------------------------------------------------------
def _reference(mu, log_var, lambd=1.0):
    mu = mu.astype(jnp.float32)
    log_var = log_var.astype(jnp.float32)
    loss = 0.5 * jnp.sum(-log_var - 1.0 + mu ** 2 + jnp.exp(log_var), axis=1)
    return lambd * jnp.mean(loss)


if __name__ == "__main__":
    key = jax.random.PRNGKey(0)
    k1, k2, k3, k4 = jax.random.split(key, 4)

    # Shapes consistent with the module: VAE latent statistics [batch, latent].
    B, D = 8, 128
    mu = jax.random.normal(k1, (B, D), jnp.float32) * 0.5
    lv = jax.random.normal(k2, (B, D), jnp.float32) * 0.3

    fwd = jax.jit(functools.partial(kl_div_loss, lambd=1.0))
    loss = fwd(mu, lv)
    jax.block_until_ready(loss)
    ref = _reference(mu, lv, 1.0)
    assert loss.shape == ()
    assert bool(jnp.isfinite(loss))
    assert bool(jnp.allclose(loss, ref, rtol=1e-4, atol=1e-4)), (loss, ref)

    # Ragged lane-dense slab (N % 128 == 0 but rows % 8 != 0) -> tail mask.
    mu2 = jax.random.normal(k3, (20, 96), jnp.float32)
    lv2 = jax.random.normal(k4, (20, 96), jnp.float32) * 0.2
    loss2 = jax.jit(functools.partial(kl_div_loss, lambd=0.5))(mu2, lv2)
    jax.block_until_ready(loss2)
    ref2 = _reference(mu2, lv2, 0.5)
    assert bool(jnp.allclose(loss2, ref2, rtol=1e-4, atol=1e-4)), (loss2, ref2)

    # bf16 inputs stream at 2B/elem (no wrapper upcast), f32 math in-kernel.
    mu3 = (jax.random.normal(k1, (16, 64)) * 0.4).astype(jnp.bfloat16)
    lv3 = (jax.random.normal(k2, (16, 64)) * 0.2).astype(jnp.bfloat16)
    loss3 = jax.jit(functools.partial(kl_div_loss, lambd=1.0))(mu3, lv3)
    jax.block_until_ready(loss3)
    ref3 = _reference(mu3, lv3, 1.0)
    assert bool(jnp.allclose(jnp.float32(loss3), ref3, rtol=2e-2, atol=2e-2)), (loss3, ref3)

    # Multi-block + 2-way parallel split path (small block override).
    mu4 = jax.random.normal(k3, (64, 128), jnp.float32)
    lv4 = jax.random.normal(k4, (64, 128), jnp.float32) * 0.1
    loss4 = jax.jit(functools.partial(kl_div_loss, lambd=1.0, block_rows=8))(mu4, lv4)
    jax.block_until_ready(loss4)
    ref4 = _reference(mu4, lv4, 1.0)
    assert bool(jnp.allclose(loss4, ref4, rtol=1e-4, atol=1e-4)), (loss4, ref4)

    # Odd tiny fallback (N % 128 != 0, rows < 8): single full-dim block.
    mu5 = jax.random.normal(k1, (3, 40), jnp.float32)
    lv5 = jax.random.normal(k2, (3, 40), jnp.float32) * 0.3
    loss5 = jax.jit(functools.partial(kl_div_loss, lambd=2.0))(mu5, lv5)
    jax.block_until_ready(loss5)
    ref5 = _reference(mu5, lv5, 2.0)
    assert bool(jnp.allclose(loss5, ref5, rtol=1e-4, atol=1e-4)), (loss5, ref5)

    print("KERNEL_OK")
</pallas_src>

<mosaic_0001>
module attributes {stable_mosaic.version = 11 : i64} {
  func.func @_kl_div_kernel(%arg0: i32, %arg1: i32, %arg2: memref<8x128xf32, #tpu.memory_space<vmem>>, %arg3: memref<8x128xf32, #tpu.memory_space<vmem>>, %arg4: memref<1x1xf32, #tpu.memory_space<vmem>>, %arg5: memref<8x128xf32, #tpu.memory_space<vmem>>) attributes {dimension_semantics = [#tpu.dimension_semantics<parallel>, #tpu.dimension_semantics<arbitrary>], iteration_bounds = array<i64: 1, 1>, scalar_prefetch = 0 : i64, scratch_operands = 1 : i64, tpu.core_type = #tpu.core_type<tc>, window_params = [{transform_indices = @transform_0, window_bounds = array<i64: 8, 128>}, {transform_indices = @transform_1, window_bounds = array<i64: 8, 128>}, {transform_indices = @transform_2, window_bounds = array<i64: 1, 1>}]} {
    %c0_i32 = arith.constant 0 : i32
    %0 = arith.cmpi eq, %arg1, %c0_i32 : i32
    %1 = arith.extui %0 : i1 to i32
    %c0_i32_0 = arith.constant 0 : i32
    %2 = arith.cmpi ne, %1, %c0_i32_0 : i32
    scf.if %2 {
      %cst_11 = arith.constant 0.000000e+00 : f32
      %19 = vector.broadcast %cst_11 : f32 to vector<8x128xf32>
      %c0_12 = arith.constant 0 : index
      %c0_13 = arith.constant 0 : index
      %20 = vector.load %arg5[%c0_12, %c0_13] : memref<8x128xf32, #tpu.memory_space<vmem>>, vector<8x128xf32>
      tpu.vector_store %arg5[%c0_12, %c0_13], %19 {strides = array<i32>} : memref<8x128xf32, #tpu.memory_space<vmem>>, vector<8x128xf32>,
    } else {
    }
    %c0 = arith.constant 0 : index
    %c0_1 = arith.constant 0 : index
    %3 = vector.load %arg2[%c0, %c0_1] : memref<8x128xf32, #tpu.memory_space<vmem>>, vector<8x128xf32>
    %c0_2 = arith.constant 0 : index
    %c0_3 = arith.constant 0 : index
    %4 = vector.load %arg3[%c0_2, %c0_3] : memref<8x128xf32, #tpu.memory_space<vmem>>, vector<8x128xf32>
    %5 = math.exp %4 : vector<8x128xf32>
    %6 = arith.subf %5, %4 : vector<8x128xf32>
    %7 = arith.mulf %3, %3 : vector<8x128xf32>
    %cst = arith.constant 1.000000e+00 : f32
    %8 = vector.broadcast %cst : f32 to vector<8x128xf32>
    %9 = arith.subf %7, %8 : vector<8x128xf32>
    %10 = arith.addf %6, %9 : vector<8x128xf32>
    %c0_4 = arith.constant 0 : index
    %c0_5 = arith.constant 0 : index
    %11 = vector.load %arg5[%c0_4, %c0_5] : memref<8x128xf32, #tpu.memory_space<vmem>>, vector<8x128xf32>
    %12 = vector.shape_cast %10 : vector<8x128xf32> to vector<1x8x128xf32>
    %cst_6 = arith.constant dense<0.000000e+00> : vector<8x128xf32>
    %13 = vector.multi_reduction <add>, %12, %cst_6 [0] : vector<1x8x128xf32> to vector<8x128xf32>
    %14 = arith.addf %11, %13 : vector<8x128xf32>
    %c0_7 = arith.constant 0 : index
    %c0_8 = arith.constant 0 : index
    %15 = vector.load %arg5[%c0_7, %c0_8] : memref<8x128xf32, #tpu.memory_space<vmem>>, vector<8x128xf32>
    tpu.vector_store %arg5[%c0_7, %c0_8], %14 {strides = array<i32>} : memref<8x128xf32, #tpu.memory_space<vmem>>, vector<8x128xf32>,
    %c0_i32_9 = arith.constant 0 : i32
    %16 = arith.cmpi eq, %arg1, %c0_i32_9 : i32
    %17 = arith.extui %16 : i1 to i32
    %c0_i32_10 = arith.constant 0 : i32
    %18 = arith.cmpi ne, %17, %c0_i32_10 : i32
    scf.if %18 {
      %c0_11 = arith.constant 0 : index
      %c0_12 = arith.constant 0 : index
      %19 = vector.load %arg5[%c0_11, %c0_12] : memref<8x128xf32, #tpu.memory_space<vmem>>, vector<8x128xf32>
      %20 = vector.shape_cast %19 : vector<8x128xf32> to vector<1x8x128xf32>
      %cst_13 = arith.constant dense<0.000000e+00> : vector<1xf32>
      %21 = vector.multi_reduction <add>, %20, %cst_13 [1, 2] : vector<1x8x128xf32> to vector<1xf32>
      %22 = vector.shape_cast %21 : vector<1xf32> to vector<1x1x1xf32>
      %23 = vector.extract %22[0, 0, 0] : f32 from vector<1x1x1xf32>
      %24 = vector.broadcast %23 : f32 to vector<1x1xf32>
      %cst_14 = arith.constant 6.250000e-02 : f32
      %25 = vector.broadcast %cst_14 : f32 to vector<1x1xf32>
      %26 = arith.mulf %24, %25 : vector<1x1xf32>
      %c0_15 = arith.constant 0 : index
      %c0_16 = arith.constant 0 : index
      %27 = vector.load %arg4[%c0_15, %c0_16] : memref<1x1xf32, #tpu.memory_space<vmem>>, vector<1x1xf32>
      tpu.vector_store %arg4[%c0_15, %c0_16], %26 {strides = array<i32>} : memref<1x1xf32, #tpu.memory_space<vmem>>, vector<1x1xf32>,
    } else {
    }
    return
  }
  func.func @transform_0(%arg0: i32, %arg1: i32) -> (i32, i32) {
    %c1_i32 = arith.constant 1 : i32
    %0 = arith.muli %arg0, %c1_i32 : i32
    %1 = arith.addi %0, %arg1 : i32
    %c0_i32 = arith.constant 0 : i32
    %c0_i32_0 = arith.constant 0 : i32
    return %1, %c0_i32 : i32, i32
  }
  func.func @transform_1(%arg0: i32, %arg1: i32) -> (i32, i32) {
    %c1_i32 = arith.constant 1 : i32
    %0 = arith.muli %arg0, %c1_i32 : i32
    %1 = arith.addi %0, %arg1 : i32
    %c0_i32 = arith.constant 0 : i32
    %c0_i32_0 = arith.constant 0 : i32
    return %1, %c0_i32 : i32, i32
  }
  func.func @transform_2(%arg0: i32, %arg1: i32) -> (i32, i32) {
    %c0_i32 = arith.constant 0 : i32
    %c0_i32_0 = arith.constant 0 : i32
    return %arg0, %c0_i32 : i32, i32
  }
}

</mosaic_0001>

<llo_original>
// kernel: kl_div_loss.1
$region0: #{kl_div_loss.1}
  #allocation0 [shape = 'u32[]', space=smem, size = 0x4, offset = 0x4, fixed_abs, tag = 'smem constant byte address 0x4 - core index']
  #allocation1 [shape = 'u32[72,128]{1,0:T(1,128)}', space=vmem, size = 0x9000, scoped, tag = 'internal scratch']
  #allocation2 [shape = 'f32[8,128]{1,0:T(8,128)}', space=vmem, size = 0x1000, scoped, tag = 'scratch operand']
  %s0 = inlined_call_operand.hbm [shape: f32[8,128], index: 0, kind: input, shape index: {}]
  %s1 = inlined_call_operand.hbm [shape: f32[8,128], index: 1, kind: input, shape index: {}]
  %s2 = inlined_call_operand.hbm [shape: f32[1,1], index: 2, kind: output, shape index: {}]
  %s3 = sld [smem:[#allocation0]]
  $region34: #{kl_div_loss.1} parent=0
    _
  %s5 = ssub.s32 1, %s3
  %s6 = scalar_select 0, %s5, %s3
  $region1: #{kl_div_loss.1} parent=0
    #allocation3 [shape = 'u8[4096]{0}', space=vmem, size = 0x1000, scoped, tag = 'input window, operand 0, single buffered']
    #allocation4 [shape = 's32[1]{0}', space=sflag, size = 0x4, scoped, tag = 'scoped memory for kl_div_loss.1']
    #allocation5 [shape = 's32[1]{0}', space=sflag, size = 0x4, scoped, tag = 'scoped memory for kl_div_loss.1']
    #allocation6 [shape = 'u8[4096]{0}', space=vmem, size = 0x1000, scoped, tag = 'input window, operand 1, single buffered']
    #allocation7 [shape = 's32[1]{0}', space=sflag, size = 0x4, scoped, tag = 'scoped memory for kl_div_loss.1']
    #allocation8 [shape = 'u8[512]{0}', space=vmem, size = 0x400, scoped, tag = 'output window, operand 0, single buffered']
    %7 = vsyncpa [#allocation4], 0
    %8 = vsyncpa [#allocation7], 0
    %9 = vsyncpa [#allocation5], 0
    // Predicated region
    $region2: #{kl_div_loss.1} parent=1 // pred_check
      _
    $region3: #{kl_div_loss.1} parent=1 // pred_check_branch
      %11 = sbr.rel (0) target = $region5
    $region4: #{kl_div_loss.1} parent=1 // pred_region
      %s12 = sadd.s32 0, 0
      %14 = vsyncadd [#allocation4], 0
      %s15 = smul.addr %s12, 8
      %s16 = scalar_lea.hbm %s0, %s15
      %s18 = sshll.u32 %s16, 4
      %s19 = int_to_ptr.hbm [resolvable:$true] %s18
      %s20 = sshll.u32 [#allocation3], 4
      %s21 = int_to_ptr.vmem [resolvable:$true] %s20
      %23 = dma.hbm_to_vmem [thread:$0]  %s19, 128, %s21, [#allocation4]
    $region5: #{kl_div_loss.1} parent=1 // pred_fallthru
      _
    // Predicated region
    $region6: #{kl_div_loss.1} parent=1 // pred_check
      _
    $region7: #{kl_div_loss.1} parent=1 // pred_check_branch
      %25 = sbr.rel (0) target = $region9
    $region8: #{kl_div_loss.1} parent=1 // pred_region
      %s26 = sadd.s32 0, 0
      %28 = vsyncadd [#allocation7], 0
      %s29 = smul.addr %s26, 8
      %s30 = scalar_lea.hbm %s1, %s29
      %s32 = sshll.u32 %s30, 4
      %s33 = int_to_ptr.hbm [resolvable:$true] %s32
      %s34 = sshll.u32 [#allocation6], 4
      %s35 = int_to_ptr.vmem [resolvable:$true] %s34
      %37 = dma.hbm_to_vmem [thread:$0]  %s33, 128, %s35, [#allocation7]
    $region9: #{kl_div_loss.1} parent=1 // pred_fallthru
      _
    // Predicated region
    $region10: #{kl_div_loss.1} parent=1 // pred_check
      _
    $region11: #{kl_div_loss.1} parent=1 // pred_check_branch
      %39 = sbr.rel (0) target = $region13
    $region12: #{kl_div_loss.1} parent=1 // pred_region
      %41 = dma.done [#allocation4], 128
    $region13: #{kl_div_loss.1} parent=1 // pred_fallthru
      _
    // Predicated region
    $region14: #{kl_div_loss.1} parent=1 // pred_check
      _
    $region15: #{kl_div_loss.1} parent=1 // pred_check_branch
      %43 = sbr.rel (0) target = $region17
    $region16: #{kl_div_loss.1} parent=1 // pred_region
      %45 = dma.done [#allocation7], 128
    $region17: #{kl_div_loss.1} parent=1 // pred_fallthru
      _
    %s46 = sadd.s32 0, 0
    %s47 = sadd.s32 0, 0
    %p48 = scmp.eq.s32.totalorder 0, 0
    // Predicated region
    $region18: #{kl_div_loss.1} parent=1 // pred_check
      %p49 = pneg %p48
    $region19: #{kl_div_loss.1} parent=1 // pred_check_branch
      %51 = sbr.rel (%p49) target = $region21
    $region20: #{kl_div_loss.1} parent=1 // pred_region
      %52 = vst [vmem:[#allocation2] sm:$0xff] 0.0
    $region21: #{kl_div_loss.1} parent=1 // pred_fallthru
      _
    %v53 = vld [vmem:[#allocation3] sm:$0xff]
    %v54 = vld [vmem:[#allocation6] sm:$0xff]
    %v55 = vmul.f32 %v54, 1.442695
    %v56 = vpow.pop %v55
    %v57 = vsub.f32 %v56, %v54
    %v58 = vmul.f32 %v53, %v53
    %v59 = vsub.f32 %v58, 1.0
    %v60 = vadd.f32 %v57, %v59
    %v61 = vld [vmem:[#allocation2] sm:$0xff]
    %v62 = vadd.f32 %v60, 0.0
    %v63 = vadd.f32 %v61, %v62
    %64 = vst [vmem:[#allocation2] sm:$0xff] %v63
    // Predicated region
    $region22: #{kl_div_loss.1} parent=1 // pred_check
      %p65 = pneg %p48
    $region23: #{kl_div_loss.1} parent=1 // pred_check_branch
      %67 = sbr.rel (%p65) target = $region25
    $region24: #{kl_div_loss.1} parent=1 // pred_region
      %v68 = vld [vmem:[#allocation2] sm:$0xff]
      %69 = vadd.xlane.f32.xlu0 %v68
      %v70 = vpop.xlane.xlu0 %69
      %v71 = vrot.slane %v70, 4
      %v72 = vadd.f32 %v70, %v71
      %v73 = vrot.slane %v72, 2
      %v74 = vadd.f32 %v72, %v73
      %v75 = vrot.slane %v74, 1
      %v76 = vadd.f32 %v74, %v75
      %s77 = vtos %v76
      %v78 = vstv %s77
      %v79 = vmul.f32 %v78, 0.0625
      %vm80 = vcmask 0
      %81 = vst.msk [vmem:[#allocation8] sm:$0x1] %vm80, %v79
    $region25: #{kl_div_loss.1} parent=1 // pred_fallthru
      _
    // Predicated region
    $region26: #{kl_div_loss.1} parent=1 // pred_check
      _
    $region27: #{kl_div_loss.1} parent=1 // pred_check_branch
      %83 = sbr.rel (0) target = $region29
    $region28: #{kl_div_loss.1} parent=1 // pred_region
      %85 = vsyncadd [#allocation5], 0
      %s87 = sshll.u32 [#allocation8], 4
      %s88 = int_to_ptr.vmem [resolvable:$true] %s87
      %s89 = sshll.u32 %s2, 4
      %s90 = int_to_ptr.hbm [resolvable:$true] %s89
      %92 = dma.vmem_to_hbm [thread:$0]  %s88, 16, %s90, [#allocation5]
    $region29: #{kl_div_loss.1} parent=1 // pred_fallthru
      _
    // Predicated region
    $region30: #{kl_div_loss.1} parent=1 // pred_check
      _
    $region31: #{kl_div_loss.1} parent=1 // pred_check_branch
      %94 = sbr.rel (0) target = $region33
    $region32: #{kl_div_loss.1} parent=1 // pred_region
      %96 = dma.done [#allocation5], 16
    $region33: #{kl_div_loss.1} parent=1 // pred_fallthru
      _
    %97 = vsyncpa [#allocation4], 1
    %98 = vsyncpa [#allocation7], 1
    %99 = vsyncpa [#allocation5], 1

</llo_original>
